<compile_context>
chip_gen: v5e
topology: v5e:2x2
jax: 0.10.0
libtpu: 0.0.40
codegen_flags: <defaults>
</compile_context>

<pallas_src>
import functools
import math

import jax
import jax.numpy as jnp
from jax.experimental import pallas as pl
from jax.experimental.pallas import tpu as pltpu

_MAX_LEN = 15  # PositionalEmbedding(max_len=15)


def _build_pe_table(d_model, W, dtype):
    """Returns pe transposed to (d_model, W), matching torch PositionalEmbedding."""
    position = jnp.arange(_MAX_LEN, dtype=jnp.float32)[:, None]          # (max_len, 1)
    div_term = jnp.exp(
        jnp.arange(0, d_model, 2, dtype=jnp.float32)
        * -(math.log(10000.0) / d_model)
    )                                                                     # (d_model//2,)
    pe = jnp.zeros((_MAX_LEN, d_model), jnp.float32)
    pe = pe.at[:, 0::2].set(jnp.sin(position * div_term))
    pe = pe.at[:, 1::2].set(jnp.cos(position * div_term))
    return pe[:W, :].T.astype(dtype)                                      # (d_model, W)


def _concat_pe_kernel(x_ref, xm_ref, pe_ref, out_ref, *, H, W, Wm, TC):
    # x_ref  : (NB, TC, H*W)
    # xm_ref : (NB, TC, H*Wm)
    # pe_ref : (C, W)   full table, VMEM resident (constant block index)
    # out_ref: (NB, TC, H*W_total)
    NB = x_ref.shape[0]
    C_full = pe_ref.shape[0]
    W_total = W + Wm + W

    if TC == C_full:
        pe_tc = pe_ref[...]                                   # (TC, W)
    else:
        c0 = pl.multiple_of(pl.program_id(1) * TC, TC)        # aligned, TC | C
        pe_tc = pe_ref[pl.ds(c0, TC), :]                      # (TC, W)
    pos = jnp.broadcast_to(pe_tc[None, :, :], (NB, TC, W))    # hoisted out of h loop

    for h in range(H):  # static unroll: H per-h slice stores into the dense lane axis
        base = h * W_total
        out_ref[:, :, base:base + W] = x_ref[:, :, h * W:(h + 1) * W]
        out_ref[:, :, base + W:base + W + Wm] = xm_ref[:, :, h * Wm:(h + 1) * Wm]
        out_ref[:, :, base + W + Wm:base + W_total] = pos


def _choose_tiles(B, C, H, W, Wm, dtype, budget_bytes):
    """Pick (NB, TC) with NB|B, TC|C, padded (double-buffered) footprint <= budget,
    preferring >= 2 grid steps (megacore / pipeline overlap) then the largest block."""
    W_total = W + Wm + W
    itemsize = jnp.dtype(dtype).itemsize
    pack = {4: 8, 2: 16, 1: 32}.get(itemsize, 8)   # sublane pack per dtype width
    lane_bytes = sum(
        (-(-d // 128)) * 128 for d in (H * W, H * Wm, H * W_total)
    ) * itemsize

    def padded_bytes(nb, tc):
        rows = nb * (-(-tc // pack)) * pack
        return rows * lane_bytes * 2               # x2: Pallas double buffering

    tc_opts = [t for t in range(pack, C + 1, pack) if C % t == 0]
    if not tc_opts:
        tc_opts = [C]                              # full-dim block is always legal
    nb_opts = [n for n in range(1, B + 1) if B % n == 0]

    candidates = [(nb, tc) for tc in tc_opts for nb in nb_opts]
    fitting = [c for c in candidates if padded_bytes(*c) <= budget_bytes]
    if not fitting:
        return 1, tc_opts[0]

    def score(c):
        nb, tc = c
        steps = (B // nb) * (C // tc)
        return (steps >= 2, nb * tc)
    return max(fitting, key=score)


def data_embedding(x, x_mark, *, d_model, vmem_block_budget_bytes=4 * 1024 * 1024):
    """Pallas implementation of DataEmbedding.forward(x, x_mark)."""
    B, C, H, W = x.shape
    Bm, Cm, Hm, Wm = x_mark.shape
    assert (B, C, H) == (Bm, Cm, Hm), "concat along axis=3 requires matching leading dims"
    assert C == d_model, "reference forward only type-checks when C == d_model"
    assert d_model % 2 == 0, "PositionalEmbedding requires even d_model"
    assert W <= _MAX_LEN, "PositionalEmbedding max_len=15"

    W_total = W + Wm + W

    # Free row-major view reshapes: flatten trailing (H, W*) into one dense lane axis.
    x2 = x.reshape(B, C, H * W)
    xm2 = x_mark.reshape(B, C, H * Wm)
    pe_cw = _build_pe_table(d_model, W, x.dtype)                          # (C, W)

    NB, TC = _choose_tiles(B, C, H, W, Wm, x.dtype, vmem_block_budget_bytes)
    grid = (B // NB, C // TC)

    kernel = functools.partial(_concat_pe_kernel, H=H, W=W, Wm=Wm, TC=TC)

    out3 = pl.pallas_call(
        kernel,
        out_shape=jax.ShapeDtypeStruct((B, C, H * W_total), x.dtype),
        grid_spec=pltpu.PrefetchScalarGridSpec(
            num_scalar_prefetch=0,
            grid=grid,
            in_specs=[
                pl.BlockSpec((NB, TC, H * W), lambda b, c: (b, c, 0)),
                pl.BlockSpec((NB, TC, H * Wm), lambda b, c: (b, c, 0)),
                # Full PE table, constant block index -> stays VMEM resident, no per-step DMA.
                pl.BlockSpec((C, W), lambda b, c: (0, 0)),
            ],
            out_specs=pl.BlockSpec((NB, TC, H * W_total), lambda b, c: (b, c, 0)),
        ),
        compiler_params=pltpu.CompilerParams(
            dimension_semantics=("parallel", "parallel"),
            # Padded per-step footprint is kept <= ~4 MiB by _choose_tiles, so this
            # stays well under v7x's 64 MiB physical VMEM and every scoped default.
            vmem_limit_bytes=32 * 1024 * 1024,
        ),
    )(x2, xm2, pe_cw)

    return out3.reshape(B, C, H, W_total)


def _reference(x, x_mark, d_model):
    """Plain-JAX reproduction of the PyTorch forward (for verification)."""
    B, C, H, W = x.shape
    position = jnp.arange(_MAX_LEN, dtype=jnp.float32)[:, None]
    div_term = jnp.exp(
        jnp.arange(0, d_model, 2, dtype=jnp.float32)
        * -(math.log(10000.0) / d_model)
    )
    pe = jnp.zeros((_MAX_LEN, d_model), jnp.float32)
    pe = pe.at[:, 0::2].set(jnp.sin(position * div_term))
    pe = pe.at[:, 1::2].set(jnp.cos(position * div_term))
    out = pe[None, :W]                                                    # (1, W, d_model)
    out = out[:, :, None, :]                                              # (1, W, 1, d_model)
    out = jnp.broadcast_to(out, (B, W, H, d_model))
    x_pos = jnp.transpose(out, (0, 3, 2, 1))                              # (B, d_model, H, W)
    return jnp.concatenate((x, x_mark, x_pos), axis=3)


if __name__ == "__main__":
    B, C, H, W = 2, 8, 4, 8      # C == d_model, W <= max_len (15)
    Wm = 5
    d_model = C

    key = jax.random.PRNGKey(0)
    kx, km = jax.random.split(key)
    x = jax.random.normal(kx, (B, C, H, W), dtype=jnp.float32)
    x_mark = jax.random.normal(km, (B, C, H, Wm), dtype=jnp.float32)

    out = data_embedding(x, x_mark, d_model=d_model)
    out = jax.block_until_ready(out)

    ref = _reference(x, x_mark, d_model)
    assert out.shape == (B, C, H, W + Wm + W), out.shape
    assert jnp.allclose(out, ref, atol=1e-5, rtol=1e-5), "mismatch vs reference"

    print("KERNEL_OK")
</pallas_src>

<mosaic_0001>
module attributes {stable_mosaic.version = 11 : i64} {
  func.func @_concat_pe_kernel(%arg0: i32, %arg1: i32, %arg2: memref<1x8x32xf32, #tpu.memory_space<vmem>>, %arg3: memref<1x8x20xf32, #tpu.memory_space<vmem>>, %arg4: memref<8x8xf32, #tpu.memory_space<vmem>>, %arg5: memref<1x8x84xf32, #tpu.memory_space<vmem>>) attributes {dimension_semantics = [#tpu.dimension_semantics<parallel>, #tpu.dimension_semantics<parallel>], iteration_bounds = array<i64: 2, 1>, scalar_prefetch = 0 : i64, scratch_operands = 0 : i64, tpu.core_type = #tpu.core_type<tc>, window_params = [{transform_indices = @transform_0, window_bounds = array<i64: 1, 8, 32>}, {transform_indices = @transform_1, window_bounds = array<i64: 1, 8, 20>}, {pipeline_mode = #tpu.pipeline_mode<synchronous>, transform_indices = @transform_2, window_bounds = array<i64: 8, 8>}, {transform_indices = @transform_3, window_bounds = array<i64: 1, 8, 84>}]} {
    %c0 = arith.constant 0 : index
    %c0_0 = arith.constant 0 : index
    %0 = vector.load %arg4[%c0, %c0_0] : memref<8x8xf32, #tpu.memory_space<vmem>>, vector<8x8xf32>
    %1 = vector.shape_cast %0 : vector<8x8xf32> to vector<1x8x8xf32>
    %c0_1 = arith.constant 0 : index
    %c0_2 = arith.constant 0 : index
    %c0_3 = arith.constant 0 : index
    %2 = vector.load %arg2[%c0_1, %c0_2, %c0_3] : memref<1x8x32xf32, #tpu.memory_space<vmem>>, vector<1x8x8xf32>
    %c0_4 = arith.constant 0 : index
    %c0_5 = arith.constant 0 : index
    %c0_6 = arith.constant 0 : index
    %3 = vector.load %arg5[%c0_4, %c0_5, %c0_6] : memref<1x8x84xf32, #tpu.memory_space<vmem>>, vector<1x8x8xf32>
    tpu.vector_store %arg5[%c0_4, %c0_5, %c0_6], %2 {strides = array<i32>} : memref<1x8x84xf32, #tpu.memory_space<vmem>>, vector<1x8x8xf32>,
    %c0_7 = arith.constant 0 : index
    %c0_8 = arith.constant 0 : index
    %c0_9 = arith.constant 0 : index
    %4 = vector.load %arg3[%c0_7, %c0_8, %c0_9] : memref<1x8x20xf32, #tpu.memory_space<vmem>>, vector<1x8x5xf32>
    %c0_10 = arith.constant 0 : index
    %c0_11 = arith.constant 0 : index
    %c8 = arith.constant 8 : index
    %5 = vector.load %arg5[%c0_10, %c0_11, %c8] : memref<1x8x84xf32, #tpu.memory_space<vmem>>, vector<1x8x5xf32>
    tpu.vector_store %arg5[%c0_10, %c0_11, %c8], %4 {strides = array<i32>} : memref<1x8x84xf32, #tpu.memory_space<vmem>>, vector<1x8x5xf32>,
    %c0_12 = arith.constant 0 : index
    %c0_13 = arith.constant 0 : index
    %c13 = arith.constant 13 : index
    %6 = vector.load %arg5[%c0_12, %c0_13, %c13] : memref<1x8x84xf32, #tpu.memory_space<vmem>>, vector<1x8x8xf32>
    tpu.vector_store %arg5[%c0_12, %c0_13, %c13], %1 {strides = array<i32>} : memref<1x8x84xf32, #tpu.memory_space<vmem>>, vector<1x8x8xf32>,
    %c0_14 = arith.constant 0 : index
    %c0_15 = arith.constant 0 : index
    %c8_16 = arith.constant 8 : index
    %7 = vector.load %arg2[%c0_14, %c0_15, %c8_16] : memref<1x8x32xf32, #tpu.memory_space<vmem>>, vector<1x8x8xf32>
    %c0_17 = arith.constant 0 : index
    %c0_18 = arith.constant 0 : index
    %c21 = arith.constant 21 : index
    %8 = vector.load %arg5[%c0_17, %c0_18, %c21] : memref<1x8x84xf32, #tpu.memory_space<vmem>>, vector<1x8x8xf32>
    tpu.vector_store %arg5[%c0_17, %c0_18, %c21], %7 {strides = array<i32>} : memref<1x8x84xf32, #tpu.memory_space<vmem>>, vector<1x8x8xf32>,
    %c0_19 = arith.constant 0 : index
    %c0_20 = arith.constant 0 : index
    %c5 = arith.constant 5 : index
    %9 = vector.load %arg3[%c0_19, %c0_20, %c5] : memref<1x8x20xf32, #tpu.memory_space<vmem>>, vector<1x8x5xf32>
    %c0_21 = arith.constant 0 : index
    %c0_22 = arith.constant 0 : index
    %c29 = arith.constant 29 : index
    %10 = vector.load %arg5[%c0_21, %c0_22, %c29] : memref<1x8x84xf32, #tpu.memory_space<vmem>>, vector<1x8x5xf32>
    tpu.vector_store %arg5[%c0_21, %c0_22, %c29], %9 {strides = array<i32>} : memref<1x8x84xf32, #tpu.memory_space<vmem>>, vector<1x8x5xf32>,
    %c0_23 = arith.constant 0 : index
    %c0_24 = arith.constant 0 : index
    %c34 = arith.constant 34 : index
    %11 = vector.load %arg5[%c0_23, %c0_24, %c34] : memref<1x8x84xf32, #tpu.memory_space<vmem>>, vector<1x8x8xf32>
    tpu.vector_store %arg5[%c0_23, %c0_24, %c34], %1 {strides = array<i32>} : memref<1x8x84xf32, #tpu.memory_space<vmem>>, vector<1x8x8xf32>,
    %c0_25 = arith.constant 0 : index
    %c0_26 = arith.constant 0 : index
    %c16 = arith.constant 16 : index
    %12 = vector.load %arg2[%c0_25, %c0_26, %c16] : memref<1x8x32xf32, #tpu.memory_space<vmem>>, vector<1x8x8xf32>
    %c0_27 = arith.constant 0 : index
    %c0_28 = arith.constant 0 : index
    %c42 = arith.constant 42 : index
    %13 = vector.load %arg5[%c0_27, %c0_28, %c42] : memref<1x8x84xf32, #tpu.memory_space<vmem>>, vector<1x8x8xf32>
    tpu.vector_store %arg5[%c0_27, %c0_28, %c42], %12 {strides = array<i32>} : memref<1x8x84xf32, #tpu.memory_space<vmem>>, vector<1x8x8xf32>,
    %c0_29 = arith.constant 0 : index
    %c0_30 = arith.constant 0 : index
    %c10 = arith.constant 10 : index
    %14 = vector.load %arg3[%c0_29, %c0_30, %c10] : memref<1x8x20xf32, #tpu.memory_space<vmem>>, vector<1x8x5xf32>
    %c0_31 = arith.constant 0 : index
    %c0_32 = arith.constant 0 : index
    %c50 = arith.constant 50 : index
    %15 = vector.load %arg5[%c0_31, %c0_32, %c50] : memref<1x8x84xf32, #tpu.memory_space<vmem>>, vector<1x8x5xf32>
    tpu.vector_store %arg5[%c0_31, %c0_32, %c50], %14 {strides = array<i32>} : memref<1x8x84xf32, #tpu.memory_space<vmem>>, vector<1x8x5xf32>,
    %c0_33 = arith.constant 0 : index
    %c0_34 = arith.constant 0 : index
    %c55 = arith.constant 55 : index
    %16 = vector.load %arg5[%c0_33, %c0_34, %c55] : memref<1x8x84xf32, #tpu.memory_space<vmem>>, vector<1x8x8xf32>
    tpu.vector_store %arg5[%c0_33, %c0_34, %c55], %1 {strides = array<i32>} : memref<1x8x84xf32, #tpu.memory_space<vmem>>, vector<1x8x8xf32>,
    %c0_35 = arith.constant 0 : index
    %c0_36 = arith.constant 0 : index
    %c24 = arith.constant 24 : index
    %17 = vector.load %arg2[%c0_35, %c0_36, %c24] : memref<1x8x32xf32, #tpu.memory_space<vmem>>, vector<1x8x8xf32>
    %c0_37 = arith.constant 0 : index
    %c0_38 = arith.constant 0 : index
    %c63 = arith.constant 63 : index
    %18 = vector.load %arg5[%c0_37, %c0_38, %c63] : memref<1x8x84xf32, #tpu.memory_space<vmem>>, vector<1x8x8xf32>
    tpu.vector_store %arg5[%c0_37, %c0_38, %c63], %17 {strides = array<i32>} : memref<1x8x84xf32, #tpu.memory_space<vmem>>, vector<1x8x8xf32>,
    %c0_39 = arith.constant 0 : index
    %c0_40 = arith.constant 0 : index
    %c15 = arith.constant 15 : index
    %19 = vector.load %arg3[%c0_39, %c0_40, %c15] : memref<1x8x20xf32, #tpu.memory_space<vmem>>, vector<1x8x5xf32>
    %c0_41 = arith.constant 0 : index
    %c0_42 = arith.constant 0 : index
    %c71 = arith.constant 71 : index
    %20 = vector.load %arg5[%c0_41, %c0_42, %c71] : memref<1x8x84xf32, #tpu.memory_space<vmem>>, vector<1x8x5xf32>
    tpu.vector_store %arg5[%c0_41, %c0_42, %c71], %19 {strides = array<i32>} : memref<1x8x84xf32, #tpu.memory_space<vmem>>, vector<1x8x5xf32>,
    %c0_43 = arith.constant 0 : index
    %c0_44 = arith.constant 0 : index
    %c76 = arith.constant 76 : index
    %21 = vector.load %arg5[%c0_43, %c0_44, %c76] : memref<1x8x84xf32, #tpu.memory_space<vmem>>, vector<1x8x8xf32>
    tpu.vector_store %arg5[%c0_43, %c0_44, %c76], %1 {strides = array<i32>} : memref<1x8x84xf32, #tpu.memory_space<vmem>>, vector<1x8x8xf32>,
    return
  }
  func.func @transform_0(%arg0: i32, %arg1: i32) -> (i32, i32, i32) {
    %c0_i32 = arith.constant 0 : i32
    %c0_i32_0 = arith.constant 0 : i32
    return %arg0, %arg1, %c0_i32 : i32, i32, i32
  }
  func.func @transform_1(%arg0: i32, %arg1: i32) -> (i32, i32, i32) {
    %c0_i32 = arith.constant 0 : i32
    %c0_i32_0 = arith.constant 0 : i32
    return %arg0, %arg1, %c0_i32 : i32, i32, i32
  }
  func.func @transform_2(%arg0: i32, %arg1: i32) -> (i32, i32) {
    %c0_i32 = arith.constant 0 : i32
    %c0_i32_0 = arith.constant 0 : i32
    %c0_i32_1 = arith.constant 0 : i32
    return %c0_i32, %c0_i32_0 : i32, i32
  }
  func.func @transform_3(%arg0: i32, %arg1: i32) -> (i32, i32, i32) {
    %c0_i32 = arith.constant 0 : i32
    %c0_i32_0 = arith.constant 0 : i32
    return %arg0, %arg1, %c0_i32 : i32, i32, i32
  }
}

</mosaic_0001>

<llo_original>
// kernel: tpu_custom_call.1
$region0: #{tpu_custom_call.1}
  #allocation0 [shape = 'u32[]', space=smem, size = 0x4, offset = 0x4, fixed_abs, tag = 'smem constant byte address 0x4 - core index']
  #allocation1 [shape = 'u32[72,128]{1,0:T(1,128)}', space=vmem, size = 0x9000, scoped, tag = 'internal scratch']
  %s0 = inlined_call_operand.hbm [shape: f32[2,8,32], index: 0, kind: input, shape index: {}]
  %s1 = inlined_call_operand.hbm [shape: f32[2,8,20], index: 1, kind: input, shape index: {}]
  %s2 = inlined_call_operand.hbm [shape: f32[8,8], index: 2, kind: input, shape index: {}]
  %s3 = inlined_call_operand.hbm [shape: f32[2,8,84], index: 3, kind: output, shape index: {}]
  %s4 = sld [smem:[#allocation0]]
  $region57: #{tpu_custom_call.1} parent=0
    _
  %s6 = ssub.s32 1, %s4
  %s7 = scalar_select 0, %s6, %s4
  $region1: #{tpu_custom_call.1} parent=0
    #allocation2 [shape = 'u8[8192]{0}', space=vmem, size = 0x2000, scoped, tag = 'input window, operand 0']
    #allocation3 [shape = 's32[2]{0}', space=sflag, size = 0x8, scoped, tag = 'scoped memory for tpu_custom_call.1']
    #allocation4 [shape = 's32[2]{0}', space=sflag, size = 0x8, scoped, tag = 'scoped memory for tpu_custom_call.1']
    #allocation5 [shape = 'u8[8192]{0}', space=vmem, size = 0x2000, scoped, tag = 'input window, operand 1']
    #allocation6 [shape = 's32[2]{0}', space=sflag, size = 0x8, scoped, tag = 'scoped memory for tpu_custom_call.1']
    #allocation7 [shape = 'u8[4096]{0}', space=vmem, size = 0x1000, scoped, tag = 'input window, operand 2, single buffered']
    #allocation8 [shape = 'u8[8192]{0}', space=vmem, size = 0x2000, scoped, tag = 'output window, operand 0']
    %8 = vsyncpa [#allocation3], 0
    %s9 = scalar_lea.sflag [#allocation3], 1
    %10 = vsyncpa %s9, 0
    %11 = vsyncpa [#allocation6], 0
    %s12 = scalar_lea.sflag [#allocation6], 1
    %13 = vsyncpa %s12, 0
    %14 = vsyncpa [#allocation4], 0
    %s15 = scalar_lea.sflag [#allocation4], 1
    %16 = vsyncpa %s15, 0
    loop: start=0, step=1, limit=4
    $region2: #{tpu_custom_call.1} parent=1 // loop_pre_header
      _
    $region3: #{tpu_custom_call.1} parent=1 // loop_header
      %s18 = sphi 0, %s22
      %p19 = scmp.ge.s32.totalorder %s18, 4
      %s25 = sphi 0, %s37
      %s26 = sphi 0, %s33
      %s27 = sphi 0, %s25
      %s28 = sphi 0, %s26
      %s29 = sphi 0, %s27
      %s30 = sphi 0, %s28
      %s42 = sphi 0, %s44
      %s45 = sphi 0, %s42
      %s46 = sphi 0, %s45
      %s62 = sphi 0, %s46
      %s70 = sphi 0, %s72
      %s73 = sphi 0, %s70
      %s74 = sphi 0, %s73
      %s90 = sphi 0, %s74
      %s94 = sphi 0, %s94
      %s96 = sphi 0, %s94
      %s97 = sphi 0, %s96
      %s111 = sphi 0, %s97
      %s119 = sphi 0, %s121
      %s122 = sphi 0, %s119
      %s123 = sphi 0, %s122
      %s139 = sphi 0, %s123
    $region4: #{tpu_custom_call.1} parent=1 // loop_header_branch
      %21 = sbr.rel (%p19) target = $region8
    $region5: #{tpu_custom_call.1} parent=1 // loop_body
      %s23 = ssub.s32 %s18, 1
      %s24 = ssub.s32 %s18, 2
      %s31 = sadd.s32 1, %s26
      %p32 = scmp.ge.s32.totalorder %s31, 1
      %s33 = scalar_select %p32, 0, %s31
      %s34 = sadd.s32 1, %s25
      %s35 = scalar_select %p32, %s34, %s25
      %p36 = scmp.ge.s32.totalorder %s35, 2
      %s37 = scalar_select %p36, 0, %s35
      %s38 = ssub.s32 %s25, %s37
      %s39 = ssub.s32 %s26, %s33
      %s40 = sor.u32 %s38, %s39
      %p41 = scmp.eq.s32.totalorder %s40, 0
      %s43 = sadd.s32 %s42, 1
      %s44 = scalar_select %p41, %s42, %s43
      %p47 = pneg %p41
      %p48 = scmp.eq.s32.totalorder %s18, 1
      %p49 = por %p47, %p48
      %p50 = scmp.ne.s32.totalorder %s42, %s45
      %p51 = scmp.eq.s32.totalorder %s18, 0
      %p52 = por %p50, %p51
      %p53 = scmp.ne.s32.totalorder %s42, %s45
      %p54 = scmp.eq.s32.totalorder %s23, 1
      %p55 = por %p53, %p54
      %p56 = scmp.ne.s32.totalorder %s45, %s46
      %p57 = scmp.eq.s32.totalorder %s23, 0
      %p58 = por %p56, %p57
      %p59 = scmp.ne.s32.totalorder %s45, %s46
      %p60 = scmp.eq.s32.totalorder %s24, 1
      %p61 = por %p59, %p60
      %p63 = scmp.ne.s32.totalorder %s46, %s62
      %p64 = scmp.eq.s32.totalorder %s24, 0
      %p65 = por %p63, %p64
      %s66 = ssub.s32 %s25, %s37
      %s67 = ssub.s32 %s26, %s33
      %s68 = sor.u32 %s66, %s67
      %p69 = scmp.eq.s32.totalorder %s68, 0
      %s71 = sadd.s32 %s70, 1
      %s72 = scalar_select %p69, %s70, %s71
      %p75 = pneg %p69
      %p76 = scmp.eq.s32.totalorder %s18, 1
      %p77 = por %p75, %p76
      %p78 = scmp.ne.s32.totalorder %s70, %s73
      %p79 = scmp.eq.s32.totalorder %s18, 0
      %p80 = por %p78, %p79
      %p81 = scmp.ne.s32.totalorder %s70, %s73
      %p82 = scmp.eq.s32.totalorder %s23, 1
      %p83 = por %p81, %p82
      %p84 = scmp.ne.s32.totalorder %s73, %s74
      %p85 = scmp.eq.s32.totalorder %s23, 0
      %p86 = por %p84, %p85
      %p87 = scmp.ne.s32.totalorder %s73, %s74
      %p88 = scmp.eq.s32.totalorder %s24, 1
      %p89 = por %p87, %p88
      %p91 = scmp.ne.s32.totalorder %s74, %s90
      %p92 = scmp.eq.s32.totalorder %s24, 0
      %p93 = por %p91, %p92
      %s95 = sadd.s32 %s94, 1
      %p98 = scmp.eq.s32.totalorder %s18, 1
      %p99 = scmp.ne.s32.totalorder %s94, %s96
      %p100 = scmp.eq.s32.totalorder %s18, 0
      %p101 = por %p99, %p100
      %p102 = scmp.ne.s32.totalorder %s94, %s96
      %p103 = scmp.eq.s32.totalorder %s23, 1
      %p104 = por %p102, %p103
      %p105 = scmp.ne.s32.totalorder %s96, %s97
      %p106 = scmp.eq.s32.totalorder %s23, 0
      %p107 = por %p105, %p106
      %p108 = scmp.ne.s32.totalorder %s96, %s97
      %p109 = scmp.eq.s32.totalorder %s24, 1
      %p110 = por %p108, %p109
      %p112 = scmp.ne.s32.totalorder %s97, %s111
      %p113 = scmp.eq.s32.totalorder %s24, 0
      %p114 = por %p112, %p113
      %s115 = ssub.s32 %s25, %s37
      %s116 = ssub.s32 %s26, %s33
      %s117 = sor.u32 %s115, %s116
      %p118 = scmp.eq.s32.totalorder %s117, 0
      %s120 = sadd.s32 %s119, 1
      %s121 = scalar_select %p118, %s119, %s120
      %p124 = pneg %p118
      %p125 = scmp.eq.s32.totalorder %s18, 1
      %p126 = por %p124, %p125
      %p127 = scmp.ne.s32.totalorder %s119, %s122
      %p128 = scmp.eq.s32.totalorder %s18, 0
      %p129 = por %p127, %p128
      %p130 = scmp.ne.s32.totalorder %s119, %s122
      %p131 = scmp.eq.s32.totalorder %s23, 1
      %p132 = por %p130, %p131
      %p133 = scmp.ne.s32.totalorder %s122, %s123
      %p134 = scmp.eq.s32.totalorder %s23, 0
      %p135 = por %p133, %p134
      %p136 = scmp.ne.s32.totalorder %s122, %s123
      %p137 = scmp.eq.s32.totalorder %s24, 1
      %p138 = por %p136, %p137
      %p140 = scmp.ne.s32.totalorder %s123, %s139
      %p141 = scmp.eq.s32.totalorder %s24, 0
      %p142 = por %p140, %p141
      %p143 = scmp.le.s32.totalorder 1, %s18
      %p144 = scmp.lt.s32.totalorder %s18, 3
      %p145 = pnand %p143, %p144
      %p146 = pneg %p145
      // Predicated region
      $region9: #{tpu_custom_call.1} parent=5 // pred_check
        _
      $region10: #{tpu_custom_call.1} parent=5 // pred_check_branch
        %148 = sbr.rel (%p145) target = $region12
      $region11: #{tpu_custom_call.1} parent=5 // pred_region
        %s149 = ssub.s32 %s18, 1
        // Predicated region
        $region13: #{tpu_custom_call.1} parent=11 // pred_check
          %p150 = pneg %p107
        $region14: #{tpu_custom_call.1} parent=11 // pred_check_branch
          %152 = sbr.rel (%p150) target = $region16
        $region15: #{tpu_custom_call.1} parent=11 // pred_region
          %154 = vsyncadd [#allocation6], 0
          %s156 = sshll.u32 %s2, 4
          %s157 = int_to_ptr.hbm [resolvable:$true] %s156
          %s158 = sshll.u32 [#allocation7], 4
          %s159 = int_to_ptr.vmem [resolvable:$true] %s158
          %161 = dma.hbm_to_vmem [thread:$0]  %s157, 128, %s159, [#allocation6]
        $region16: #{tpu_custom_call.1} parent=11 // pred_fallthru
          _
      $region12: #{tpu_custom_call.1} parent=5 // pred_fallthru
        _
      %p162 = scmp.lt.s32.totalorder %s18, 2
      // Predicated region
      $region17: #{tpu_custom_call.1} parent=5 // pred_check
        %p163 = pneg %p162
      $region18: #{tpu_custom_call.1} parent=5 // pred_check_branch
        %165 = sbr.rel (%p163) target = $region20
      $region19: #{tpu_custom_call.1} parent=5 // pred_region
        // Predicated region
        $region21: #{tpu_custom_call.1} parent=19 // pred_check
          %p166 = pneg %p52
        $region22: #{tpu_custom_call.1} parent=19 // pred_check_branch
          %168 = sbr.rel (%p166) target = $region24
        $region23: #{tpu_custom_call.1} parent=19 // pred_region
          %s169 = sand.u32 %s42, 1
          %s170 = scalar_lea.sflag [#allocation3], %s169
          %s171 = sand.u32 %s42, 1
          %s172 = smul.addr %s171, 8
          %s173 = scalar_lea.vmem [#allocation2], %s172
          %175 = vsyncadd %s170, 0
          %s176 = sadd.s32 %s26, %s25
          %s177 = smul.addr %s176, 8
          %s178 = scalar_lea.hbm %s0, %s177
          %s180 = sshll.u32 %s178, 4
          %s181 = int_to_ptr.hbm [resolvable:$true] %s180
          %s182 = sshll.u32 %s173, 4
          %s183 = int_to_ptr.vmem [resolvable:$true] %s182
          %185 = dma.hbm_to_vmem [thread:$0]  %s181, 128, %s183, %s170
        $region24: #{tpu_custom_call.1} parent=19 // pred_fallthru
          _
        // Predicated region
        $region25: #{tpu_custom_call.1} parent=19 // pred_check
          %p186 = pneg %p80
        $region26: #{tpu_custom_call.1} parent=19 // pred_check_branch
          %188 = sbr.rel (%p186) target = $region28
        $region27: #{tpu_custom_call.1} parent=19 // pred_region
          %s189 = sand.u32 %s18, 1
          %s190 = scalar_lea.sflag [#allocation6], %s189
          %s191 = sand.u32 %s70, 1
          %s192 = smul.addr %s191, 8
          %s193 = scalar_lea.vmem [#allocation5], %s192
          %195 = vsyncadd %s190, 0
          %s196 = sadd.s32 %s26, %s25
          %s197 = smul.addr %s196, 8
          %s198 = scalar_lea.hbm %s1, %s197
          %s200 = sshll.u32 %s198, 4
          %s201 = int_to_ptr.hbm [resolvable:$true] %s200
          %s202 = sshll.u32 %s193, 4
          %s203 = int_to_ptr.vmem [resolvable:$true] %s202
          %205 = dma.hbm_to_vmem [thread:$0]  %s201, 128, %s203, %s190
        $region28: #{tpu_custom_call.1} parent=19 // pred_fallthru
          _
      $region20: #{tpu_custom_call.1} parent=5 // pred_fallthru
        _
      %p206 = scmp.le.s32.totalorder 1, %s18
      %p207 = scmp.lt.s32.totalorder %s18, 3
      %p208 = pnand %p206, %p207
      %p209 = pneg %p208
      // Predicated region
      $region29: #{tpu_custom_call.1} parent=5 // pred_check
        _
      $region30: #{tpu_custom_call.1} parent=5 // pred_check_branch
        %211 = sbr.rel (%p208) target = $region32
      $region31: #{tpu_custom_call.1} parent=5 // pred_region
        %s212 = ssub.s32 %s18, 1
        %s213 = sand.u32 %s45, 1
        %s214 = scalar_lea.sflag [#allocation3], %s213
        %s215 = sand.u32 %s45, 1
        %s216 = smul.addr %s215, 8
        %s217 = scalar_lea.vmem [#allocation2], %s216
        // Predicated region
        $region33: #{tpu_custom_call.1} parent=31 // pred_check
          %p218 = pneg %p58
        $region34: #{tpu_custom_call.1} parent=31 // pred_check_branch
          %220 = sbr.rel (%p218) target = $region36
        $region35: #{tpu_custom_call.1} parent=31 // pred_region
          %222 = dma.done %s214, 128
        $region36: #{tpu_custom_call.1} parent=31 // pred_fallthru
          _
        %s223 = sand.u32 %s23, 1
        %s224 = scalar_lea.sflag [#allocation6], %s223
        %s225 = sand.u32 %s73, 1
        %s226 = smul.addr %s225, 8
        %s227 = scalar_lea.vmem [#allocation5], %s226
        // Predicated region
        $region37: #{tpu_custom_call.1} parent=31 // pred_check
          %p228 = pneg %p86
        $region38: #{tpu_custom_call.1} parent=31 // pred_check_branch
          %230 = sbr.rel (%p228) target = $region40
        $region39: #{tpu_custom_call.1} parent=31 // pred_region
          %232 = dma.done %s224, 128
        $region40: #{tpu_custom_call.1} parent=31 // pred_fallthru
          _
        // Predicated region
        $region41: #{tpu_custom_call.1} parent=31 // pred_check
          %p233 = pneg %p107
        $region42: #{tpu_custom_call.1} parent=31 // pred_check_branch
          %235 = sbr.rel (%p233) target = $region44
        $region43: #{tpu_custom_call.1} parent=31 // pred_region
          %237 = dma.done [#allocation6], 128
        $region44: #{tpu_custom_call.1} parent=31 // pred_fallthru
          _
        %s238 = sand.u32 %s45, 1
        %s239 = scalar_lea.sflag [#allocation3], %s238
        %s240 = sand.u32 %s45, 1
        %s241 = smul.addr %s240, 8
        %s242 = scalar_lea.vmem [#allocation2], %s241
        %p243 = pneg %p58
        %p244 = pneg %p55
        %s245 = sand.u32 %s23, 1
        %s246 = scalar_lea.sflag [#allocation6], %s245
        %s247 = sand.u32 %s73, 1
        %s248 = smul.addr %s247, 8
        %s249 = scalar_lea.vmem [#allocation5], %s248
        %p250 = pneg %p86
        %p251 = pneg %p83
        %p252 = pneg %p107
        %p253 = pneg %p104
        %p254 = pneg %p135
        %p255 = pneg %p132
        %s256 = sand.u32 %s122, 1
        %s257 = scalar_lea.sflag [#allocation4], %s256
        %s258 = sand.u32 %s122, 1
        %s259 = smul.addr %s258, 8
        %s260 = scalar_lea.vmem [#allocation8], %s259
        %v261 = vld [vmem:[#allocation7] sm:$0xff]
        %v262 = vld [vmem:[%s217] sm:$0xff]
        %vm263 = vcmask 64512
        %264 = vst.msk [vmem:[%s260] sm:$0xff] %vm263, %v262
        %v265 = vld [vmem:[%s227] sm:$0xff]
        %267 = vrot.lane.b32.xlu0 %v265, 8
        %v268 = vpop.permute.xlu0 %267
        %vm270 = vcmask 105536
        %271 = vst.msk [vmem:[%s260] sm:$0xff] %vm270, %v268
        %273 = vrot.lane.b32.xlu0 %v261, 13
        %v274 = vpop.permute.xlu0 %273
        %vm276 = vcmask 171112
        %277 = vst.msk [vmem:[%s260] sm:$0xff] %vm276, %v274
        %v278 = vld [vmem:[%s217] sm:$0xff]
        %280 = vrot.lane.b32.xlu0 %v278, 13
        %v281 = vpop.permute.xlu0 %280
        %vm283 = vcmask 236712
        %284 = vst.msk [vmem:[%s260] sm:$0xff] %vm283, %v281
        %v285 = vld [vmem:[%s227] sm:$0xff]
        %287 = vrot.lane.b32.xlu0 %v285, 24
        %v288 = vpop.permute.xlu0 %287
        %vm290 = vcmask 277736
        %291 = vst.msk [vmem:[%s260] sm:$0xff] %vm290, %v288
        %292 = vrot.lane.b32.xlu0 %v261, 34
        %v293 = vpop.permute.xlu0 %292
        %vm295 = vcmask 343312
        %296 = vst.msk [vmem:[%s260] sm:$0xff] %vm295, %v293
        %v297 = vld [vmem:[%s217] sm:$0xff]
        %299 = vrot.lane.b32.xlu0 %v297, 26
        %v300 = vpop.permute.xlu0 %299
        %vm302 = vcmask 408912
        %303 = vst.msk [vmem:[%s260] sm:$0xff] %vm302, %v300
        %v304 = vld [vmem:[%s227] sm:$0xff]
        %306 = vrot.lane.b32.xlu0 %v304, 40
        %v307 = vpop.permute.xlu0 %306
        %vm309 = vcmask 449936
        %310 = vst.msk [vmem:[%s260] sm:$0xff] %vm309, %v307
        %311 = vrot.lane.b32.xlu0 %v261, 55
        %v312 = vpop.permute.xlu0 %311
        %vm314 = vcmask 515512
        %315 = vst.msk [vmem:[%s260] sm:$0xff] %vm314, %v312
        %v316 = vld [vmem:[%s217] sm:$0xff]
        %318 = vrot.lane.b32.xlu0 %v316, 39
        %v319 = vpop.permute.xlu0 %318
        %vm321 = vcmask 581112
        %322 = vst.msk [vmem:[%s260] sm:$0xff] %vm321, %v319
        %v323 = vld [vmem:[%s227] sm:$0xff]
        %325 = vrot.lane.b32.xlu0 %v323, 56
        %v326 = vpop.permute.xlu0 %325
        %vm328 = vcmask 622136
        %329 = vst.msk [vmem:[%s260] sm:$0xff] %vm328, %v326
        %330 = vrot.lane.b32.xlu0 %v261, 76
        %v331 = vpop.permute.xlu0 %330
        %vm333 = vcmask 687712
        %334 = vst.msk [vmem:[%s260] sm:$0xff] %vm333, %v331
        %s335 = sand.u32 %s122, 1
        %s336 = scalar_lea.sflag [#allocation4], %s335
        %s337 = sand.u32 %s122, 1
        %s338 = smul.addr %s337, 8
        %s339 = scalar_lea.vmem [#allocation8], %s338
        // Predicated region
        $region45: #{tpu_custom_call.1} parent=31 // pred_check
          %p340 = pneg %p132
        $region46: #{tpu_custom_call.1} parent=31 // pred_check_branch
          %342 = sbr.rel (%p340) target = $region48
        $region47: #{tpu_custom_call.1} parent=31 // pred_region
          %344 = vsyncadd %s336, 0
          %s345 = sadd.s32 %s28, %s27
          %s346 = smul.addr %s345, 8
          %s347 = scalar_lea.hbm %s3, %s346
          %s349 = sshll.u32 %s339, 4
          %s350 = int_to_ptr.vmem [resolvable:$true] %s349
          %s351 = sshll.u32 %s347, 4
          %s352 = int_to_ptr.hbm [resolvable:$true] %s351
          %354 = dma.vmem_to_hbm [thread:$0]  %s350, 128, %s352, %s336
        $region48: #{tpu_custom_call.1} parent=31 // pred_fallthru
          _
      $region32: #{tpu_custom_call.1} parent=5 // pred_fallthru
        _
      %p355 = scmp.le.s32.totalorder 2, %s18
      // Predicated region
      $region49: #{tpu_custom_call.1} parent=5 // pred_check
        %p356 = pneg %p355
      $region50: #{tpu_custom_call.1} parent=5 // pred_check_branch
        %358 = sbr.rel (%p356) target = $region52
      $region51: #{tpu_custom_call.1} parent=5 // pred_region
        %s359 = ssub.s32 %s18, 2
        // Predicated region
        $region53: #{tpu_custom_call.1} parent=51 // pred_check
          %p360 = pneg %p138
        $region54: #{tpu_custom_call.1} parent=51 // pred_check_branch
          %362 = sbr.rel (%p360) target = $region56
        $region55: #{tpu_custom_call.1} parent=51 // pred_region
          %s363 = sand.u32 %s123, 1
          %s364 = scalar_lea.sflag [#allocation4], %s363
          %s365 = sand.u32 %s123, 1
          %s366 = smul.addr %s365, 8
          %s367 = scalar_lea.vmem [#allocation8], %s366
          %369 = dma.done %s364, 128
        $region56: #{tpu_custom_call.1} parent=51 // pred_fallthru
          _
      $region52: #{tpu_custom_call.1} parent=5 // pred_fallthru
        _
    $region6: #{tpu_custom_call.1} parent=1 // loop_footer
      %s22 = sadd.s32 1, %s18
    $region7: #{tpu_custom_call.1} parent=1 // loop_footer_branch
      %17 = sbr.rel target = $region3
    $region8: #{tpu_custom_call.1} parent=1 // loop_exit
      _
    %370 = vsyncpa [#allocation3], 1
    %s371 = scalar_lea.sflag [#allocation3], 1
    %372 = vsyncpa %s371, 1
    %373 = vsyncpa [#allocation6], 1
    %s374 = scalar_lea.sflag [#allocation6], 1
    %375 = vsyncpa %s374, 1
    %376 = vsyncpa [#allocation4], 1
    %s377 = scalar_lea.sflag [#allocation4], 1
    %378 = vsyncpa %s377, 1

</llo_original>
